<compile_context>
chip_gen: v5e
topology: v5e:2x2
jax: 0.10.0
libtpu: 0.0.40
codegen_flags: <defaults>
</compile_context>

<pallas_src>
import functools

import jax
import jax.numpy as jnp
from jax.experimental import pallas as pl
from jax.experimental.pallas import tpu as pltpu


def _round_up(x, m):
    return ((x + m - 1) // m) * m


def _tpu_vmem_and_cores():
    """Best-effort hardware query: (per-core VMEM bytes, has 2 TensorCores)."""
    vmem_cap = 64 << 20          # conservative default (v7x per-TC VMEM)
    dual_tc = False
    try:
        info = pltpu.get_tpu_info()
        cap = int(getattr(info, "vmem_capacity_bytes", 0) or 0)
        if cap > 0:
            vmem_cap = cap
    except Exception:
        pass
    try:
        kind = jax.devices()[0].device_kind.lower()
        dual_tc = ("v7" in kind) or ("tpu7" in kind)
    except Exception:
        pass
    return vmem_cap, dual_tc


def _layernorm_affine(y, p, eps, c2_true):
    """y: (tm, c2_pad) f32 linear output; p: (3, c2_pad) f32 = [bias already added
    upstream? no: p[0]=bias unused here]."""
    c2_pad = y.shape[-1]
    inv_n = jnp.float32(1.0 / c2_true)
    # Padded C2 lanes hold exactly 0 (zero weight columns + zero bias), so the plain
    # sum already equals the sum over the true features.
    mean = jnp.sum(y, axis=-1, keepdims=True) * inv_n
    centered = y - mean
    if c2_pad != c2_true:
        # (1, c2_pad) mask, broadcast over rows (no full-tile iota temporary).
        lane_mask = jax.lax.broadcasted_iota(jnp.int32, (1, c2_pad), 1) < c2_true
        centered = jnp.where(lane_mask, centered, 0.0)
    var = jnp.sum(centered * centered, axis=-1, keepdims=True) * inv_n
    y = centered * jax.lax.rsqrt(var + eps)
    return y * p[1:2, :] + p[2:3, :]


def _fr_fused_kernel(x_ref, w_ref, p_ref, o_ref, *, eps, c2_true):
    # x_ref: (tm, C1)  w_ref: (C1, C2p)  p_ref: (3, C2p) = [bias; gamma; beta]
    # Linear: native-dtype operands straight into the MXU, f32 accumulation.
    y = jnp.dot(x_ref[...], w_ref[...], preferred_element_type=jnp.float32)
    p = p_ref[...].astype(jnp.float32)
    y = y + p[0:1, :]
    y = _layernorm_affine(y, p, eps, c2_true)
    # Dropout: identity at inference time.
    # TODO(synk): training-mode dropout (pltpu.prng_seed + prng_random_bits mask
    #             + 1/(1-p) scale) not emitted.
    o_ref[...] = y.astype(o_ref.dtype)


def _fr_ktiled_kernel(x_ref, w_ref, p_ref, o_ref, acc_ref, *, eps, c2_true, c1_true, tk):
    # Fallback for weights too large to keep resident: accumulate over C1 tiles.
    k = pl.program_id(1)

    @pl.when(k == 0)
    def _():
        acc_ref[...] = jnp.zeros_like(acc_ref)

    x = x_ref[...]
    if c1_true % tk != 0:
        # Last K block reads past C1: zero the tail columns so (0 * 0-padded-weight)
        # contributes exactly 0 (garbage could be NaN/Inf otherwise).
        col0 = k * tk
        kmask = (col0 + jax.lax.broadcasted_iota(jnp.int32, (1, tk), 1)) < c1_true
        x = jnp.where(kmask, x, jnp.array(0, dtype=x.dtype))
    acc_ref[...] += jnp.dot(x, w_ref[...], preferred_element_type=jnp.float32)

    @pl.when(k == pl.num_programs(1) - 1)
    def _():
        p = p_ref[...].astype(jnp.float32)
        y = acc_ref[...] + p[0:1, :]
        y = _layernorm_affine(y, p, eps, c2_true)
        o_ref[...] = y.astype(o_ref.dtype)


def feature_resizer(encoder_features, weight, bias, gamma, beta, *,
                    eps=1e-12, do_ln=True, target_block_rows=512,
                    vmem_budget_bytes=None):
    """encoder_features: (..., C1); weight: (C1, C2); bias/gamma/beta: (C2,)."""
    assert do_ln, "kernel fuses LN; do_ln=False variant not needed here"
    orig_shape = encoder_features.shape
    c1 = orig_shape[-1]
    c2 = weight.shape[1]
    assert weight.shape[0] == c1

    x2d = encoder_features.reshape(-1, c1)
    n_rows = x2d.shape[0]
    out_dtype = encoder_features.dtype

    in_itemsize = jnp.dtype(encoder_features.dtype).itemsize
    w_itemsize = jnp.dtype(weight.dtype).itemsize
    out_itemsize = jnp.dtype(out_dtype).itemsize

    c2_pad = _round_up(c2, 128)             # lane-dense stores
    row_mult = max(8, 32 // in_itemsize)    # 8 rows for f32, 16 for bf16

    # -------- generation-aware VMEM budget / compiler limit -------------------
    vmem_cap, dual_tc = _tpu_vmem_and_cores()
    if vmem_budget_bytes is None:
        # ~48 MiB on v7x (64 MiB/TC), ~96 MiB on v5e/v6e (128 MiB).
        vmem_budget_bytes = int(min(0.75 * vmem_cap, vmem_cap - (16 << 20)))
    vmem_limit_bytes = int(min(vmem_cap - (8 << 20),
                               max(vmem_budget_bytes + (8 << 20), 32 << 20)))

    # -------- row tile ---------------------------------------------------------
    tm_full = _round_up(n_rows, row_mult)
    tm = min(target_block_rows, tm_full)
    if dual_tc and n_rows >= 4 * 256:
        # v7x (2 TCs): even grid of >= 4 steps (>= 2 per core keeps DMA/compute
        # overlap inside each core) with tiles kept >= 256 rows.
        steps = max(4, pl.cdiv(n_rows, tm))
        if steps % 2:
            steps += 1
        tm = max(256, _round_up(pl.cdiv(n_rows, steps), row_mult))
    # Single-TC chips (v5e/v6e): the grid is a sequential loop; never halve the tile
    # just for "parallelism".

    def vmem_main(tm_):
        return (2 * tm_ * c1 * in_itemsize          # x tile, 2-deep pipeline
                + 1 * c1 * c2_pad * w_itemsize      # resident weight, Buffered(1)
                + 2 * tm_ * c2_pad * out_itemsize   # out tile, 2-deep
                + 3 * c2_pad * 4                    # stacked params, Buffered(1)
                + 3 * tm_ * c2_pad * 4)             # f32 temporaries inside the body

    while tm > row_mult and vmem_main(tm) > vmem_budget_bytes:
        tm = max(row_mult, _round_up(tm // 2, row_mult))

    cost = pl.CostEstimate(
        flops=2 * n_rows * c1 * c2_pad,
        transcendentals=0,
        bytes_accessed=(n_rows * c1 * in_itemsize
                        + c1 * c2_pad * w_itemsize
                        + 3 * c2_pad * 4
                        + n_rows * c2_pad * out_itemsize),
    )

    # bias / gamma / beta stacked into one (3, c2_pad) f32 block (single tiny DMA).
    params = jnp.stack([
        jnp.pad(bias.astype(jnp.float32), (0, c2_pad - c2)),
        jnp.pad(gamma.astype(jnp.float32), (0, c2_pad - c2)),
        jnp.pad(beta.astype(jnp.float32), (0, c2_pad - c2)),
    ])

    if vmem_main(tm) <= vmem_budget_bytes:
        # ---------------- main path: resident weight, rows-only grid ----------
        w_p = weight if c2_pad == c2 else jnp.pad(weight, ((0, 0), (0, c2_pad - c2)))
        grid = (pl.cdiv(n_rows, tm),)
        kernel = functools.partial(_fr_fused_kernel, eps=eps, c2_true=c2)
        out2d = pl.pallas_call(
            kernel,
            out_shape=jax.ShapeDtypeStruct((n_rows, c2_pad), out_dtype),
            grid_spec=pltpu.PrefetchScalarGridSpec(
                num_scalar_prefetch=0,
                grid=grid,
                in_specs=[
                    # x rows tile (unpadded C1: block dim == full array dim).
                    pl.BlockSpec((tm, c1), lambda i: (i, 0)),
                    # Weight: revisited every step -> single-buffered.
                    pl.BlockSpec((c1, c2_pad), lambda i: (0, 0),
                                 pipeline_mode=pl.Buffered(1)),
                    # Stacked bias/gamma/beta: revisited -> single-buffered.
                    pl.BlockSpec((3, c2_pad), lambda i: (0, 0),
                                 pipeline_mode=pl.Buffered(1)),
                ],
                out_specs=pl.BlockSpec((tm, c2_pad), lambda i: (i, 0)),
            ),
            compiler_params=pltpu.CompilerParams(
                dimension_semantics=("parallel",),
                vmem_limit_bytes=vmem_limit_bytes),
            cost_estimate=cost,
        )(x2d, w_p, params)
    else:
        # ------------- fallback path: K(C1)-tiled matmul accumulation ---------
        def vmem_ktiled(tm_, tk_):
            return (2 * tm_ * tk_ * in_itemsize
                    + 2 * tk_ * c2_pad * w_itemsize
                    + 2 * tm_ * c2_pad * out_itemsize
                    + tm_ * c2_pad * 4              # f32 accumulator scratch
                    + 3 * c2_pad * 4
                    + 3 * tm_ * c2_pad * 4)

        tk = min(512, _round_up(c1, 128))
        tm_k = min(256, tm_full)
        while tk > 128 and vmem_ktiled(tm_k, tk) > vmem_budget_bytes:
            tk = max(128, ((tk // 2) // 128) * 128)
        while tm_k > row_mult and vmem_ktiled(tm_k, tk) > vmem_budget_bytes:
            tm_k = max(row_mult, _round_up(tm_k // 2, row_mult))

        kp = _round_up(c1, tk)
        # Weight K/C2 pad with true zeros: padded-K rows must be exactly 0 so the
        # in-kernel x mask makes every padded-K term 0*0 == 0.
        w_p = jnp.pad(weight, ((0, kp - c1), (0, c2_pad - c2)))
        grid = (pl.cdiv(n_rows, tm_k), kp // tk)
        kernel = functools.partial(_fr_ktiled_kernel, eps=eps, c2_true=c2,
                                   c1_true=c1, tk=tk)
        out2d = pl.pallas_call(
            kernel,
            out_shape=jax.ShapeDtypeStruct((n_rows, c2_pad), out_dtype),
            grid_spec=pltpu.PrefetchScalarGridSpec(
                num_scalar_prefetch=0,
                grid=grid,
                in_specs=[
                    pl.BlockSpec((tm_k, tk), lambda i, k: (i, k)),
                    pl.BlockSpec((tk, c2_pad), lambda i, k: (k, 0)),
                    pl.BlockSpec((3, c2_pad), lambda i, k: (0, 0),
                                 pipeline_mode=pl.Buffered(1)),
                ],
                out_specs=pl.BlockSpec((tm_k, c2_pad), lambda i, k: (i, 0)),
                scratch_shapes=[pltpu.VMEM((tm_k, c2_pad), jnp.float32)],
            ),
            compiler_params=pltpu.CompilerParams(
                dimension_semantics=("parallel", "arbitrary"),
                vmem_limit_bytes=vmem_limit_bytes),
            cost_estimate=cost,
        )(x2d, w_p, params)

    if c2_pad != c2:
        out2d = out2d[:, :c2]
    return out2d.reshape(*orig_shape[:-1], c2)


def reference(encoder_features, weight, bias, gamma, beta, eps=1e-12):
    x = jnp.einsum("...i,io->...o", encoder_features.astype(jnp.float32),
                   weight.astype(jnp.float32)) + bias.astype(jnp.float32)
    mean = jnp.mean(x, axis=-1, keepdims=True)
    var = jnp.mean((x - mean) ** 2, axis=-1, keepdims=True)
    x = (x - mean) / jnp.sqrt(var + eps)
    return x * gamma.astype(jnp.float32) + beta.astype(jnp.float32)


if __name__ == "__main__":
    key = jax.random.PRNGKey(0)

    # Test 1: small f32 shapes (B, S, C1) -> (B, S, C2); unpadded C1, padded C2 lanes.
    B, S, C1, C2 = 2, 8, 16, 32
    kx, kw, kb, kg, kbt, k2 = jax.random.split(key, 6)
    x = jax.random.normal(kx, (B, S, C1), dtype=jnp.float32)
    weight = jax.random.normal(kw, (C1, C2), dtype=jnp.float32) * 0.05   # stored (C1, C2)
    bias = jax.random.normal(kb, (C2,), dtype=jnp.float32) * 0.01
    gamma = 1.0 + 0.1 * jax.random.normal(kg, (C2,), dtype=jnp.float32)
    beta = 0.1 * jax.random.normal(kbt, (C2,), dtype=jnp.float32)

    out = jax.block_until_ready(feature_resizer(x, weight, bias, gamma, beta))
    ref = reference(x, weight, bias, gamma, beta)
    assert out.shape == (B, S, C2)
    assert jnp.allclose(out, ref, atol=1e-5, rtol=1e-5)

    # Test 2: bf16 inputs, multi-row-of-8/16 rows, non-128-multiple C1/C2: exercises
    # the unpadded-C1 block, padded-C2 masked LayerNorm, lane-dense output path.
    B2, S2, C1b, C2b = 2, 192, 40, 72
    kx2, kw2, kb2, kg2, kbt2, k3 = jax.random.split(k2, 6)
    xb = jax.random.normal(kx2, (B2, S2, C1b), dtype=jnp.float32).astype(jnp.bfloat16)
    wb = (jax.random.normal(kw2, (C1b, C2b), dtype=jnp.float32) * 0.05).astype(jnp.bfloat16)
    bb = jax.random.normal(kb2, (C2b,), dtype=jnp.float32) * 0.01
    gb = 1.0 + 0.1 * jax.random.normal(kg2, (C2b,), dtype=jnp.float32)
    btb = 0.1 * jax.random.normal(kbt2, (C2b,), dtype=jnp.float32)

    outb = jax.block_until_ready(feature_resizer(xb, wb, bb, gb, btb))
    refb = reference(xb, wb, bb, gb, btb)
    assert outb.shape == (B2, S2, C2b)
    assert jnp.allclose(outb.astype(jnp.float32), refb, atol=6e-2, rtol=6e-2)

    # Test 3: force the K(C1)-tiled fallback path via a tiny artificial VMEM budget
    # (exercises the accumulator, the K-tail mask, and the zero-padded weight K rows).
    B3, S3, C1c, C2c = 1, 64, 300, 72
    kx3, kw3, kb3, kg3, kbt3 = jax.random.split(k3, 5)
    xc = jax.random.normal(kx3, (B3, S3, C1c), dtype=jnp.float32)
    wc = jax.random.normal(kw3, (C1c, C2c), dtype=jnp.float32) * 0.05
    bc = jax.random.normal(kb3, (C2c,), dtype=jnp.float32) * 0.01
    gc = 1.0 + 0.1 * jax.random.normal(kg3, (C2c,), dtype=jnp.float32)
    btc = 0.1 * jax.random.normal(kbt3, (C2c,), dtype=jnp.float32)

    outc = jax.block_until_ready(
        feature_resizer(xc, wc, bc, gc, btc, vmem_budget_bytes=180 * 1024))
    refc = reference(xc, wc, bc, gc, btc)
    assert outc.shape == (B3, S3, C2c)
    assert jnp.allclose(outc, refc, atol=2e-3, rtol=2e-3)

    print("KERNEL_OK")
</pallas_src>

<mosaic_0001>
module attributes {stable_mosaic.version = 11 : i64} {
  func.func @_fr_fused_kernel(%arg0: i32, %arg1: memref<16x16xf32, #tpu.memory_space<vmem>>, %arg2: memref<16x128xf32, #tpu.memory_space<vmem>>, %arg3: memref<3x128xf32, #tpu.memory_space<vmem>>, %arg4: memref<16x128xf32, #tpu.memory_space<vmem>>) attributes {dimension_semantics = [#tpu.dimension_semantics<parallel>], iteration_bounds = array<i64: 1>, scalar_prefetch = 0 : i64, scratch_operands = 0 : i64, tpu.core_type = #tpu.core_type<tc>, window_params = [{transform_indices = @transform_0, window_bounds = array<i64: 16, 16>}, {pipeline_mode = #tpu.pipeline_mode<synchronous>, transform_indices = @transform_1, window_bounds = array<i64: 16, 128>}, {pipeline_mode = #tpu.pipeline_mode<synchronous>, transform_indices = @transform_2, window_bounds = array<i64: 3, 128>}, {transform_indices = @transform_3, window_bounds = array<i64: 16, 128>}]} {
    %c0 = arith.constant 0 : index
    %c0_0 = arith.constant 0 : index
    %0 = vector.load %arg1[%c0, %c0_0] : memref<16x16xf32, #tpu.memory_space<vmem>>, vector<16x16xf32>
    %c0_1 = arith.constant 0 : index
    %c0_2 = arith.constant 0 : index
    %1 = vector.load %arg2[%c0_1, %c0_2] : memref<16x128xf32, #tpu.memory_space<vmem>>, vector<16x128xf32>
    %cst = arith.constant dense<0.000000e+00> : vector<16x128xf32>
    %2 = tpu.matmul %0, %1, %cst {dimension_numbers = #tpu.dot_dimension_numbers<[1], [0], [0], [1], [0, 0, 1, 1], [], []>} : vector<16x16xf32>, vector<16x128xf32>, vector<16x128xf32> -> vector<16x128xf32>
    %c0_3 = arith.constant 0 : index
    %c0_4 = arith.constant 0 : index
    %3 = vector.load %arg3[%c0_3, %c0_4] : memref<3x128xf32, #tpu.memory_space<vmem>>, vector<3x128xf32>
    %4 = vector.extract_strided_slice %3 {offsets = [0, 0], sizes = [1, 128], strides = [1, 1]} : vector<3x128xf32> to vector<1x128xf32>
    %5 = vector.broadcast %4 : vector<1x128xf32> to vector<16x128xf32>
    %6 = arith.addf %2, %5 : vector<16x128xf32>
    %cst_5 = arith.constant dense<0.000000e+00> : vector<16xf32>
    %7 = vector.multi_reduction <add>, %6, %cst_5 [1] : vector<16x128xf32> to vector<16xf32>
    %8 = vector.shape_cast %7 : vector<16xf32> to vector<16x1xf32>
    %cst_6 = arith.constant 3.125000e-02 : f32
    %9 = vector.broadcast %cst_6 : f32 to vector<16x1xf32>
    %10 = arith.mulf %8, %9 : vector<16x1xf32>
    %11 = vector.broadcast %10 : vector<16x1xf32> to vector<16x128xf32>
    %12 = arith.subf %6, %11 : vector<16x128xf32>
    %13 = tpu.iota {dimensions = array<i32: 1>} : vector<1x128xi32>
    %c32_i32 = arith.constant 32 : i32
    %14 = vector.broadcast %c32_i32 : i32 to vector<1x128xi32>
    %15 = arith.cmpi slt, %13, %14 : vector<1x128xi32>
    %cst_7 = arith.constant 0.000000e+00 : f32
    %16 = vector.shape_cast %15 : vector<1x128xi1> to vector<1x128xi1>
    %17 = vector.broadcast %16 : vector<1x128xi1> to vector<16x128xi1>
    %18 = vector.broadcast %cst_7 : f32 to vector<16x128xf32>
    %19 = arith.select %17, %12, %18 : vector<16x128xi1>, vector<16x128xf32>
    %20 = arith.mulf %19, %19 : vector<16x128xf32>
    %cst_8 = arith.constant dense<0.000000e+00> : vector<16xf32>
    %21 = vector.multi_reduction <add>, %20, %cst_8 [1] : vector<16x128xf32> to vector<16xf32>
    %22 = vector.shape_cast %21 : vector<16xf32> to vector<16x1xf32>
    %cst_9 = arith.constant 3.125000e-02 : f32
    %23 = vector.broadcast %cst_9 : f32 to vector<16x1xf32>
    %24 = arith.mulf %22, %23 : vector<16x1xf32>
    %cst_10 = arith.constant 9.99999996E-13 : f32
    %25 = vector.broadcast %cst_10 : f32 to vector<16x1xf32>
    %26 = arith.addf %24, %25 : vector<16x1xf32>
    %27 = math.rsqrt %26 : vector<16x1xf32>
    %28 = vector.broadcast %27 : vector<16x1xf32> to vector<16x128xf32>
    %29 = arith.mulf %19, %28 : vector<16x128xf32>
    %30 = vector.extract_strided_slice %3 {offsets = [1, 0], sizes = [1, 128], strides = [1, 1]} : vector<3x128xf32> to vector<1x128xf32>
    %31 = vector.broadcast %30 : vector<1x128xf32> to vector<16x128xf32>
    %32 = arith.mulf %29, %31 : vector<16x128xf32>
    %33 = vector.extract_strided_slice %3 {offsets = [2, 0], sizes = [1, 128], strides = [1, 1]} : vector<3x128xf32> to vector<1x128xf32>
    %34 = vector.broadcast %33 : vector<1x128xf32> to vector<16x128xf32>
    %35 = arith.addf %32, %34 : vector<16x128xf32>
    %c0_11 = arith.constant 0 : index
    %c0_12 = arith.constant 0 : index
    %36 = vector.load %arg4[%c0_11, %c0_12] : memref<16x128xf32, #tpu.memory_space<vmem>>, vector<16x128xf32>
    tpu.vector_store %arg4[%c0_11, %c0_12], %35 {strides = array<i32>} : memref<16x128xf32, #tpu.memory_space<vmem>>, vector<16x128xf32>,
    return
  }
  func.func @transform_0(%arg0: i32) -> (i32, i32) {
    %c0_i32 = arith.constant 0 : i32
    %c0_i32_0 = arith.constant 0 : i32
    return %arg0, %c0_i32 : i32, i32
  }
  func.func @transform_1(%arg0: i32) -> (i32, i32) {
    %c0_i32 = arith.constant 0 : i32
    %c0_i32_0 = arith.constant 0 : i32
    %c0_i32_1 = arith.constant 0 : i32
    return %c0_i32, %c0_i32_0 : i32, i32
  }
  func.func @transform_2(%arg0: i32) -> (i32, i32) {
    %c0_i32 = arith.constant 0 : i32
    %c0_i32_0 = arith.constant 0 : i32
    %c0_i32_1 = arith.constant 0 : i32
    return %c0_i32, %c0_i32_0 : i32, i32
  }
  func.func @transform_3(%arg0: i32) -> (i32, i32) {
    %c0_i32 = arith.constant 0 : i32
    %c0_i32_0 = arith.constant 0 : i32
    return %arg0, %c0_i32 : i32, i32
  }
}

</mosaic_0001>

<llo_original>
// kernel: tpu_custom_call.1
$region0: #{tpu_custom_call.1}
  #allocation0 [shape = 'u32[]', space=smem, size = 0x4, offset = 0x4, fixed_abs, tag = 'smem constant byte address 0x4 - core index']
  #allocation1 [shape = 'u32[72,128]{1,0:T(1,128)}', space=vmem, size = 0x9000, scoped, tag = 'internal scratch']
  %s0 = inlined_call_operand.hbm [shape: f32[16,16], index: 0, kind: input, shape index: {}]
  %s1 = inlined_call_operand.hbm [shape: f32[16,128], index: 1, kind: input, shape index: {}]
  %s2 = inlined_call_operand.hbm [shape: f32[3,128], index: 2, kind: input, shape index: {}]
  %s3 = inlined_call_operand.hbm [shape: f32[16,128], index: 3, kind: output, shape index: {}]
  %s4 = sld [smem:[#allocation0]]
  $region34: #{tpu_custom_call.1} parent=0
    _
  %s6 = ssub.s32 1, %s4
  %s7 = scalar_select 0, %s6, %s4
  $region1: #{tpu_custom_call.1} parent=0
    #allocation2 [shape = 'u8[8192]{0}', space=vmem, size = 0x2000, scoped, tag = 'input window, operand 0, single buffered']
    #allocation3 [shape = 's32[1]{0}', space=sflag, size = 0x4, scoped, tag = 'scoped memory for tpu_custom_call.1']
    #allocation4 [shape = 's32[1]{0}', space=sflag, size = 0x4, scoped, tag = 'scoped memory for tpu_custom_call.1']
    #allocation5 [shape = 'u8[8192]{0}', space=vmem, size = 0x2000, scoped, tag = 'input window, operand 1, single buffered']
    #allocation6 [shape = 's32[1]{0}', space=sflag, size = 0x4, scoped, tag = 'scoped memory for tpu_custom_call.1']
    #allocation7 [shape = 'u8[2048]{0}', space=vmem, size = 0x800, scoped, tag = 'input window, operand 2, single buffered']
    #allocation8 [shape = 'u8[8192]{0}', space=vmem, size = 0x2000, scoped, tag = 'output window, operand 0, single buffered']
    %8 = vsyncpa [#allocation3], 0
    %9 = vsyncpa [#allocation6], 0
    %10 = vsyncpa [#allocation4], 0
    // Predicated region
    $region2: #{tpu_custom_call.1} parent=1 // pred_check
      _
    $region3: #{tpu_custom_call.1} parent=1 // pred_check_branch
      %12 = sbr.rel (0) target = $region5
    $region4: #{tpu_custom_call.1} parent=1 // pred_region
      %14 = vsyncadd [#allocation3], 0
      %s15 = sshll.u32 %s0, 4
      %s16 = int_to_ptr.hbm [resolvable:$true] %s15
      %s17 = sshll.u32 [#allocation2], 4
      %s18 = int_to_ptr.vmem [resolvable:$true] %s17
      %23 = dma.hbm_to_vmem [thread:$0]  %s16, 256, %s18, [#allocation3], 128, 128, 8
    $region5: #{tpu_custom_call.1} parent=1 // pred_fallthru
      _
    // Predicated region
    $region6: #{tpu_custom_call.1} parent=1 // pred_check
      _
    $region7: #{tpu_custom_call.1} parent=1 // pred_check_branch
      %25 = sbr.rel (0) target = $region9
    $region8: #{tpu_custom_call.1} parent=1 // pred_region
      %27 = vsyncadd [#allocation6], 0
      %s28 = sshll.u32 %s1, 4
      %s29 = int_to_ptr.hbm [resolvable:$true] %s28
      %s30 = sshll.u32 [#allocation5], 4
      %s31 = int_to_ptr.vmem [resolvable:$true] %s30
      %36 = dma.hbm_to_vmem [thread:$0]  %s29, 256, %s31, [#allocation6], 128, 128, 8
    $region9: #{tpu_custom_call.1} parent=1 // pred_fallthru
      _
    // Predicated region
    $region10: #{tpu_custom_call.1} parent=1 // pred_check
      _
    $region11: #{tpu_custom_call.1} parent=1 // pred_check_branch
      %38 = sbr.rel (0) target = $region13
    $region12: #{tpu_custom_call.1} parent=1 // pred_region
      %40 = vsyncadd [#allocation6], 0
      %s42 = sshll.u32 %s2, 4
      %s43 = int_to_ptr.hbm [resolvable:$true] %s42
      %s44 = sshll.u32 [#allocation7], 4
      %s45 = int_to_ptr.vmem [resolvable:$true] %s44
      %47 = dma.hbm_to_vmem [thread:$0]  %s43, 64, %s45, [#allocation6]
    $region13: #{tpu_custom_call.1} parent=1 // pred_fallthru
      _
    // Predicated region
    $region14: #{tpu_custom_call.1} parent=1 // pred_check
      _
    $region15: #{tpu_custom_call.1} parent=1 // pred_check_branch
      %49 = sbr.rel (0) target = $region17
    $region16: #{tpu_custom_call.1} parent=1 // pred_region
      %51 = dma.done [#allocation3], 256
    $region17: #{tpu_custom_call.1} parent=1 // pred_fallthru
      _
    // Predicated region
    $region18: #{tpu_custom_call.1} parent=1 // pred_check
      _
    $region19: #{tpu_custom_call.1} parent=1 // pred_check_branch
      %53 = sbr.rel (0) target = $region21
    $region20: #{tpu_custom_call.1} parent=1 // pred_region
      %55 = dma.done [#allocation6], 256
    $region21: #{tpu_custom_call.1} parent=1 // pred_fallthru
      _
    // Predicated region
    $region22: #{tpu_custom_call.1} parent=1 // pred_check
      _
    $region23: #{tpu_custom_call.1} parent=1 // pred_check_branch
      %57 = sbr.rel (0) target = $region25
    $region24: #{tpu_custom_call.1} parent=1 // pred_region
      %59 = dma.done [#allocation6], 64
    $region25: #{tpu_custom_call.1} parent=1 // pred_fallthru
      _
    %v60 = vld [vmem:[#allocation2] sm:$0xff]
    %v61 = vld [vmem:[#allocation2 + $0x8] sm:$0xff]
    %v62 = vld [vmem:[#allocation5] sm:$0xff]
    %v63 = vld [vmem:[#allocation5 + $0x8] sm:$0xff]
    %v64 = vld [vmem:[#allocation7] sm:$0x7]
    %v65 = vperm.slane %v64, 0
    %vm66 = vcmask 130048
    %v68 = vsel %vm66, %v60, 0
    %v71 = vsel %vm66, %v61, 0
    %73 = vmatpush.msra.mxu0 0.0
    %74 = vmatpush.msra.mxu0 0.0
    %75 = vmatpush.msra.mxu0 0.0
    %76 = vmatpush.msra.mxu0 0.0
    %77 = vmatpush.msra.mxu0 0.0
    %78 = vmatpush.msra.mxu0 0.0
    %79 = vmatpush.msra.mxu0 0.0
    %80 = vmatpush.msra.mxu0 0.0
    %81 = vmatpush.msra.mxu0 0.0
    %82 = vmatpush.msra.mxu0 0.0
    %83 = vmatpush.msra.mxu0 0.0
    %84 = vmatpush.msra.mxu0 0.0
    %85 = vmatpush.msra.mxu0 0.0
    %86 = vmatpush.msra.mxu0 0.0
    %87 = vmatpush.msra.mxu0 %v63
    %88 = vmatpush.msra.mxu0 %v62
    %89 = vmatmul.f32.gmra.mxu0 %v68
    %v90 = vpop.f32.mrf.mxu0
    %v91 = vadd.f32 %v65, %v90
    %92 = vmatmul.f32.gmra.mxu0 %v71
    %v93 = vpop.f32.mrf.mxu0
    %v94 = vadd.f32 %v65, %v93
    %95 = vdwg.mxu0
    %96 = vadd.xlane.f32.xlu0 %v91
    %v97 = vpop.xlane.xlu0 %96
    %98 = vadd.xlane.f32.xlu0 %v94
    %v99 = vpop.xlane.xlu0 %98
    %v100 = vmul.f32 %v97, 0.03125
    %v101 = vmul.f32 %v99, 0.03125
    %v102 = vsub.f32 %v91, %v100
    %v103 = vsub.f32 %v94, %v101
    %v104 = vlaneseq
    %v105 = vand.u32 %v104, 127
    %vm106 = vcmp.lt.s32.totalorder %v105, 32
    %v107 = vsel %vm106, 1, 0
    %vm108 = vcmp.eq.s32.totalorder %v107, 1
    %v109 = vsel %vm108, %v102, 0.0
    %v110 = vsel %vm108, %v103, 0.0
    %v111 = vmul.f32 %v109, %v109
    %v112 = vmul.f32 %v110, %v110
    %113 = vadd.xlane.f32.xlu0 %v111
    %v114 = vpop.xlane.xlu0 %113
    %115 = vadd.xlane.f32.xlu0 %v112
    %v116 = vpop.xlane.xlu0 %115
    %v117 = vmul.f32 %v114, 0.03125
    %v118 = vmul.f32 %v116, 0.03125
    %v119 = vadd.f32 %v117, 1e-12
    %v120 = vadd.f32 %v118, 1e-12
    %v121 = vrsqrt.pop %v119
    %v122 = vmul.f32 %v121, %v119
    %v123 = vmul.f32 %v122, %v121
    %v124 = vmul.f32 0.5, %v123
    %v125 = vsub.f32 1.5, %v124
    %v126 = vmul.f32 %v121, %v125
    %vm127 = vweird.f32 %v119
    %vm128 = vweird.f32 %v121
    %vm129 = vmor %vm127, %vm128
    %v130 = vsel %vm129, %v121, %v126
    %v131 = vrsqrt.pop %v120
    %v132 = vmul.f32 %v131, %v120
    %v133 = vmul.f32 %v132, %v131
    %v134 = vmul.f32 0.5, %v133
    %v135 = vsub.f32 1.5, %v134
    %v136 = vmul.f32 %v131, %v135
    %vm137 = vweird.f32 %v120
    %vm138 = vweird.f32 %v131
    %vm139 = vmor %vm137, %vm138
    %v140 = vsel %vm139, %v131, %v136
    %v141 = vmul.f32 %v109, %v130
    %v142 = vmul.f32 %v110, %v140
    %v143 = vperm.slane %v64, 1
    %v144 = vmul.f32 %v141, %v143
    %v145 = vmul.f32 %v142, %v143
    %v146 = vperm.slane %v64, 2
    %v147 = vadd.f32 %v144, %v146
    %v148 = vadd.f32 %v145, %v146
    %149 = vst [vmem:[#allocation8] sm:$0xff] %v147
    %150 = vst [vmem:[#allocation8 + $0x8] sm:$0xff] %v148
    // Predicated region
    $region26: #{tpu_custom_call.1} parent=1 // pred_check
      _
    $region27: #{tpu_custom_call.1} parent=1 // pred_check_branch
      %152 = sbr.rel (0) target = $region29
    $region28: #{tpu_custom_call.1} parent=1 // pred_region
      %154 = vsyncadd [#allocation4], 0
      %s155 = sshll.u32 [#allocation8], 4
      %s156 = int_to_ptr.vmem [resolvable:$true] %s155
      %s157 = sshll.u32 %s3, 4
      %s158 = int_to_ptr.hbm [resolvable:$true] %s157
      %163 = dma.vmem_to_hbm [thread:$0]  %s156, 256, %s158, [#allocation4], 128, 128, 8
    $region29: #{tpu_custom_call.1} parent=1 // pred_fallthru
      _
    // Predicated region
    $region30: #{tpu_custom_call.1} parent=1 // pred_check
      _
    $region31: #{tpu_custom_call.1} parent=1 // pred_check_branch
      %165 = sbr.rel (0) target = $region33
    $region32: #{tpu_custom_call.1} parent=1 // pred_region
      %167 = dma.done [#allocation4], 256
    $region33: #{tpu_custom_call.1} parent=1 // pred_fallthru
      _
    %168 = vsyncpa [#allocation3], 1
    %169 = vsyncpa [#allocation6], 1
    %170 = vsyncpa [#allocation4], 1

</llo_original>
